<compile_context>
chip_gen: v7x
topology: tpu7x:2x2x1
jax: 0.10.0
libtpu: 0.0.40
codegen_flags: <defaults>
</compile_context>

<pallas_src>
import math

import jax
import jax.numpy as jnp
from jax.experimental import pallas as pl
from jax.experimental.pallas import tpu as pltpu


_H1, _H2, _H3 = 512, 256, 128
_MIN_TILE = 256          # MXU-aligned batch granularity (multiple of 128 too)


def _round_up(n, m):
    return ((n + m - 1) // m) * m


def _mlp_kernel(x_ref,
                w1_ref, b1_ref,
                w2_ref, b2_ref,
                w3_ref, b3_ref,
                w4_ref, b4_ref,
                o_ref):
    """One batch tile: three MXU matmuls (bf16 in, f32 acc) + lane-dense head."""
    x = x_ref[...]                                                 # (TB, Dp) bf16

    h1 = jnp.dot(x, w1_ref[...], preferred_element_type=jnp.float32) + b1_ref[...]
    h1 = jnp.maximum(h1, 0.0).astype(jnp.bfloat16)                 # (TB, 512)

    h2 = jnp.dot(h1, w2_ref[...], preferred_element_type=jnp.float32) + b2_ref[...]
    h2 = jnp.maximum(h2, 0.0).astype(jnp.bfloat16)                 # (TB, 256)

    h3 = jnp.dot(h2, w3_ref[...], preferred_element_type=jnp.float32) + b3_ref[...]
    h3 = jnp.maximum(h3, 0.0)                                      # f32 (TB, 128)

    # Final Linear(128 -> 1), produced directly as a lane-dense (1, TB) row:
    # transpose h3 (XLU slot, hidden under the MXU-bound body) and contract
    # with the sublane-replicated head weight on the MXU.
    h3_t = h3.T                                                    # (128, TB) f32
    head = jnp.dot(w4_ref[...], h3_t,
                   preferred_element_type=jnp.float32)             # (8, TB), rows identical
    o_ref[...] = head[0:1, :] + b4_ref[0, 0]                       # (1, TB) f32


def init_params(key, input_dim):
    """nn.Linear-style U(-1/sqrt(fan_in), 1/sqrt(fan_in)) init, stored kernel-ready.

    Weights are stored as (in, out) == PyTorch weight.T.  All per-call
    preprocessing is hoisted here:
      * w1 zero-padded along its input dim to a multiple of 128 lanes,
      * hidden-layer weights cast to bf16 (MXU operand dtype), biases f32,
      * the 128->1 head weight stored as a sublane-replicated (8, 128) f32 row,
      * its bias stored as a (1, 1) f32 scalar (goes to SMEM).
    """
    dims = [(input_dim, _H1), (_H1, _H2), (_H2, _H3), (_H3, 1)]
    raw = []
    for fan_in, fan_out in dims:
        key, kw, kb = jax.random.split(key, 3)
        bound = 1.0 / math.sqrt(float(fan_in))
        w = jax.random.uniform(kw, (fan_in, fan_out), jnp.float32, -bound, bound)
        b = jax.random.uniform(kb, (1, fan_out), jnp.float32, -bound, bound)
        raw.append((w, b))
    (w1, b1), (w2, b2), (w3, b3), (w4, b4) = raw

    d_pad = _round_up(input_dim, 128)
    if d_pad != input_dim:
        w1 = jnp.pad(w1, ((0, d_pad - input_dim), (0, 0)))
    w1 = w1.astype(jnp.bfloat16)
    w2 = w2.astype(jnp.bfloat16)
    w3 = w3.astype(jnp.bfloat16)
    w4_row = jnp.tile(w4.reshape(1, _H3).astype(jnp.float32), (8, 1))   # (8, 128)
    b4 = b4.reshape(1, 1).astype(jnp.float32)                           # (1, 1)
    return ((w1, b1), (w2, b2), (w3, b3), (w4_row, b4))


def discriminator_forward(x, params, tile_b=1024):
    """x: (B, input_dim) float. params from init_params. Returns (B, 1) f32."""
    (w1, b1), (w2, b2), (w3, b3), (w4, b4) = params
    B, D = x.shape
    D_pad = w1.shape[0]

    x = x.astype(jnp.bfloat16)
    if D_pad != D:
        x = jnp.pad(x, ((0, 0), (0, D_pad - D)))

    # --- batch tile choice ----------------------------------------------------
    # Per-row VMEM estimate (bytes): streamed x block (bf16, double-buffered)
    # + live f32/bf16 intermediates (h1, h2, h3, h3^T, head) + output.
    per_row_bytes = 4 * D_pad + 6 * _H1 + 6 * _H2 + 12 * _H3 + 64
    vmem_budget = 32 * 1024 * 1024            # headroom inside v7x's 64 MiB VMEM
    vmem_cap = max(_MIN_TILE,
                   (vmem_budget // per_row_bytes) // _MIN_TILE * _MIN_TILE)
    tile_b = max(_MIN_TILE, (tile_b // _MIN_TILE) * _MIN_TILE)
    tile_b = min(tile_b, vmem_cap)

    if B < 2 * _MIN_TILE:
        # Small batch: one sublane-aligned tile.
        tile_b = _round_up(B, 8)
    else:
        # Guarantee >= 2 grid steps so the "parallel" batch axis feeds both of
        # v7x's TensorCores (harmless extra ~0.35 us on v5e/v6e).
        tile_b = min(tile_b, _round_up((B + 1) // 2, _MIN_TILE))

    B_pad = _round_up(B, tile_b)
    if B_pad != B:
        x = jnp.pad(x, ((0, B_pad - B), (0, 0)))
    num_tiles = B_pad // tile_b

    pinned = lambda a: pl.BlockSpec(a.shape, lambda i, _n=a.ndim: (0,) * _n)

    weight_bytes = sum(int(a.size) * a.dtype.itemsize
                       for a in (w1, b1, w2, b2, w3, b3, w4, b4))
    est_vmem = per_row_bytes * tile_b + 2 * weight_bytes
    vmem_limit = int(min(48 * 1024 * 1024,
                         max(32 * 1024 * 1024, 1.5 * est_vmem)))

    flops = 2 * B_pad * (D_pad * _H1 + _H1 * _H2 + _H2 * _H3 + _H3 * 8)
    bytes_accessed = int(x.size) * 2 + weight_bytes + B_pad * 4

    out = pl.pallas_call(
        _mlp_kernel,
        out_shape=jax.ShapeDtypeStruct((1, B_pad), jnp.float32),
        grid_spec=pltpu.PrefetchScalarGridSpec(
            num_scalar_prefetch=0,
            grid=(num_tiles,),
            in_specs=[
                pl.BlockSpec((tile_b, D_pad), lambda i: (i, 0)),   # x streams
                pinned(w1), pinned(b1),                            # weights pinned
                pinned(w2), pinned(b2),
                pinned(w3), pinned(b3),
                pinned(w4),
                pl.BlockSpec(memory_space=pltpu.MemorySpace.SMEM),  # b4 scalar
            ],
            out_specs=pl.BlockSpec((1, tile_b), lambda i: (0, i)),  # lane-dense
        ),
        compiler_params=pltpu.CompilerParams(
            dimension_semantics=("parallel",),
            vmem_limit_bytes=vmem_limit),
        cost_estimate=pl.CostEstimate(
            flops=flops, transcendentals=0, bytes_accessed=bytes_accessed),
    )(x, w1, b1, w2, b2, w3, b3, w4, b4)

    return out[0, :B][:, None]


def _reference_forward(x, params):
    """Pure-JAX reference mirroring the kernel's bf16-operand / f32-acc math."""
    (w1, b1), (w2, b2), (w3, b3), (w4, b4) = params
    D = x.shape[1]
    h = x.astype(jnp.bfloat16)
    h = jnp.maximum(jnp.dot(h, w1[:D], preferred_element_type=jnp.float32) + b1, 0.0)
    h = jnp.maximum(jnp.dot(h.astype(jnp.bfloat16), w2,
                            preferred_element_type=jnp.float32) + b2, 0.0)
    h = jnp.maximum(jnp.dot(h.astype(jnp.bfloat16), w3,
                            preferred_element_type=jnp.float32) + b3, 0.0)
    return jnp.sum(h * w4[0:1].astype(jnp.float32),
                   axis=-1, keepdims=True) + b4[0, 0]


if __name__ == "__main__":
    key = jax.random.PRNGKey(0)
    k_params, k_x = jax.random.split(key)

    batch, input_dim = 8, 64
    params = init_params(k_params, input_dim)
    x = jax.random.normal(k_x, (batch, input_dim), jnp.float32)

    out = discriminator_forward(x, params)
    out = jax.block_until_ready(out)

    ref = _reference_forward(x, params)
    assert out.shape == (batch, 1), out.shape
    assert jnp.allclose(out, ref, atol=1e-2, rtol=1e-2), (out, ref)

    print("KERNEL_OK")
</pallas_src>

<mosaic_0001>
module attributes {stable_mosaic.version = 11 : i64} {
  func.func @_mlp_kernel(%arg0: i32, %arg1: memref<8x128xbf16, #tpu.memory_space<vmem>>, %arg2: memref<128x512xbf16, #tpu.memory_space<vmem>>, %arg3: memref<1x512xf32, #tpu.memory_space<vmem>>, %arg4: memref<512x256xbf16, #tpu.memory_space<vmem>>, %arg5: memref<1x256xf32, #tpu.memory_space<vmem>>, %arg6: memref<256x128xbf16, #tpu.memory_space<vmem>>, %arg7: memref<1x128xf32, #tpu.memory_space<vmem>>, %arg8: memref<8x128xf32, #tpu.memory_space<vmem>>, %arg9: memref<1x1xf32, #tpu.memory_space<smem>>, %arg10: memref<1x8xf32, #tpu.memory_space<vmem>>) attributes {dimension_semantics = [#tpu.dimension_semantics<parallel>], iteration_bounds = array<i64: 1>, scalar_prefetch = 0 : i64, scratch_operands = 0 : i64, tpu.core_type = #tpu.core_type<tc>, window_params = [{transform_indices = @transform_0, window_bounds = array<i64: 8, 128>}, {pipeline_mode = #tpu.pipeline_mode<synchronous>, transform_indices = @transform_1, window_bounds = array<i64: 128, 512>}, {pipeline_mode = #tpu.pipeline_mode<synchronous>, transform_indices = @transform_2, window_bounds = array<i64: 1, 512>}, {pipeline_mode = #tpu.pipeline_mode<synchronous>, transform_indices = @transform_3, window_bounds = array<i64: 512, 256>}, {pipeline_mode = #tpu.pipeline_mode<synchronous>, transform_indices = @transform_4, window_bounds = array<i64: 1, 256>}, {pipeline_mode = #tpu.pipeline_mode<synchronous>, transform_indices = @transform_5, window_bounds = array<i64: 256, 128>}, {pipeline_mode = #tpu.pipeline_mode<synchronous>, transform_indices = @transform_6, window_bounds = array<i64: 1, 128>}, {pipeline_mode = #tpu.pipeline_mode<synchronous>, transform_indices = @transform_7, window_bounds = array<i64: 8, 128>}, {transform_indices = @transform_8, window_bounds = array<i64: 1, 1>}, {transform_indices = @transform_9, window_bounds = array<i64: 1, 8>}]} {
    %c0 = arith.constant 0 : index
    %c0_0 = arith.constant 0 : index
    %0 = vector.load %arg1[%c0, %c0_0] : memref<8x128xbf16, #tpu.memory_space<vmem>>, vector<8x128xbf16>
    %c0_1 = arith.constant 0 : index
    %c0_2 = arith.constant 0 : index
    %1 = vector.load %arg2[%c0_1, %c0_2] : memref<128x512xbf16, #tpu.memory_space<vmem>>, vector<128x512xbf16>
    %cst = arith.constant dense<0.000000e+00> : vector<8x512xf32>
    %2 = tpu.matmul %0, %1, %cst {dimension_numbers = #tpu.dot_dimension_numbers<[1], [0], [0], [1], [0, 0, 1, 1], [], []>} : vector<8x128xbf16>, vector<128x512xbf16>, vector<8x512xf32> -> vector<8x512xf32>
    %c0_3 = arith.constant 0 : index
    %c0_4 = arith.constant 0 : index
    %3 = vector.load %arg3[%c0_3, %c0_4] : memref<1x512xf32, #tpu.memory_space<vmem>>, vector<1x512xf32>
    %4 = vector.broadcast %3 : vector<1x512xf32> to vector<8x512xf32>
    %5 = arith.addf %2, %4 : vector<8x512xf32>
    %cst_5 = arith.constant 0.000000e+00 : f32
    %6 = vector.broadcast %cst_5 : f32 to vector<8x512xf32>
    %7 = arith.maximumf %5, %6 : vector<8x512xf32>
    %8 = arith.truncf %7 : vector<8x512xf32> to vector<8x512xbf16>
    %c0_6 = arith.constant 0 : index
    %c0_7 = arith.constant 0 : index
    %9 = vector.load %arg4[%c0_6, %c0_7] : memref<512x256xbf16, #tpu.memory_space<vmem>>, vector<512x256xbf16>
    %cst_8 = arith.constant dense<0.000000e+00> : vector<8x256xf32>
    %10 = tpu.matmul %8, %9, %cst_8 {dimension_numbers = #tpu.dot_dimension_numbers<[1], [0], [0], [1], [0, 0, 1, 1], [], []>} : vector<8x512xbf16>, vector<512x256xbf16>, vector<8x256xf32> -> vector<8x256xf32>
    %c0_9 = arith.constant 0 : index
    %c0_10 = arith.constant 0 : index
    %11 = vector.load %arg5[%c0_9, %c0_10] : memref<1x256xf32, #tpu.memory_space<vmem>>, vector<1x256xf32>
    %12 = vector.broadcast %11 : vector<1x256xf32> to vector<8x256xf32>
    %13 = arith.addf %10, %12 : vector<8x256xf32>
    %cst_11 = arith.constant 0.000000e+00 : f32
    %14 = vector.broadcast %cst_11 : f32 to vector<8x256xf32>
    %15 = arith.maximumf %13, %14 : vector<8x256xf32>
    %16 = arith.truncf %15 : vector<8x256xf32> to vector<8x256xbf16>
    %c0_12 = arith.constant 0 : index
    %c0_13 = arith.constant 0 : index
    %17 = vector.load %arg6[%c0_12, %c0_13] : memref<256x128xbf16, #tpu.memory_space<vmem>>, vector<256x128xbf16>
    %cst_14 = arith.constant dense<0.000000e+00> : vector<8x128xf32>
    %18 = tpu.matmul %16, %17, %cst_14 {dimension_numbers = #tpu.dot_dimension_numbers<[1], [0], [0], [1], [0, 0, 1, 1], [], []>} : vector<8x256xbf16>, vector<256x128xbf16>, vector<8x128xf32> -> vector<8x128xf32>
    %c0_15 = arith.constant 0 : index
    %c0_16 = arith.constant 0 : index
    %19 = vector.load %arg7[%c0_15, %c0_16] : memref<1x128xf32, #tpu.memory_space<vmem>>, vector<1x128xf32>
    %20 = vector.broadcast %19 : vector<1x128xf32> to vector<8x128xf32>
    %21 = arith.addf %18, %20 : vector<8x128xf32>
    %cst_17 = arith.constant 0.000000e+00 : f32
    %22 = vector.broadcast %cst_17 : f32 to vector<8x128xf32>
    %23 = arith.maximumf %21, %22 : vector<8x128xf32>
    %24 = tpu.transpose %23, [1, 0] : vector<8x128xf32> -> vector<128x8xf32>
    %c0_18 = arith.constant 0 : index
    %c0_19 = arith.constant 0 : index
    %25 = vector.load %arg8[%c0_18, %c0_19] : memref<8x128xf32, #tpu.memory_space<vmem>>, vector<8x128xf32>
    %cst_20 = arith.constant dense<0.000000e+00> : vector<8x8xf32>
    %26 = tpu.matmul %25, %24, %cst_20 {dimension_numbers = #tpu.dot_dimension_numbers<[1], [0], [0], [1], [0, 0, 1, 1], [], []>} : vector<8x128xf32>, vector<128x8xf32>, vector<8x8xf32> -> vector<8x8xf32>
    %27 = vector.extract_strided_slice %26 {offsets = [0, 0], sizes = [1, 8], strides = [1, 1]} : vector<8x8xf32> to vector<1x8xf32>
    %c0_21 = arith.constant 0 : index
    %c0_22 = arith.constant 0 : index
    %28 = memref.load %arg9[%c0_21, %c0_22] : memref<1x1xf32, #tpu.memory_space<smem>>
    %29 = vector.broadcast %28 : f32 to vector<1x8xf32>
    %30 = arith.addf %27, %29 : vector<1x8xf32>
    %c0_23 = arith.constant 0 : index
    %c0_24 = arith.constant 0 : index
    %31 = vector.load %arg10[%c0_23, %c0_24] : memref<1x8xf32, #tpu.memory_space<vmem>>, vector<1x8xf32>
    tpu.vector_store %arg10[%c0_23, %c0_24], %30 {strides = array<i32>} : memref<1x8xf32, #tpu.memory_space<vmem>>, vector<1x8xf32>,
    return
  }
  func.func @transform_0(%arg0: i32) -> (i32, i32) {
    %c0_i32 = arith.constant 0 : i32
    %c0_i32_0 = arith.constant 0 : i32
    return %arg0, %c0_i32 : i32, i32
  }
  func.func @transform_1(%arg0: i32) -> (i32, i32) {
    %c0_i32 = arith.constant 0 : i32
    %c0_i32_0 = arith.constant 0 : i32
    %c0_i32_1 = arith.constant 0 : i32
    return %c0_i32, %c0_i32_0 : i32, i32
  }
  func.func @transform_2(%arg0: i32) -> (i32, i32) {
    %c0_i32 = arith.constant 0 : i32
    %c0_i32_0 = arith.constant 0 : i32
    %c0_i32_1 = arith.constant 0 : i32
    return %c0_i32, %c0_i32_0 : i32, i32
  }
  func.func @transform_3(%arg0: i32) -> (i32, i32) {
    %c0_i32 = arith.constant 0 : i32
    %c0_i32_0 = arith.constant 0 : i32
    %c0_i32_1 = arith.constant 0 : i32
    return %c0_i32, %c0_i32_0 : i32, i32
  }
  func.func @transform_4(%arg0: i32) -> (i32, i32) {
    %c0_i32 = arith.constant 0 : i32
    %c0_i32_0 = arith.constant 0 : i32
    %c0_i32_1 = arith.constant 0 : i32
    return %c0_i32, %c0_i32_0 : i32, i32
  }
  func.func @transform_5(%arg0: i32) -> (i32, i32) {
    %c0_i32 = arith.constant 0 : i32
    %c0_i32_0 = arith.constant 0 : i32
    %c0_i32_1 = arith.constant 0 : i32
    return %c0_i32, %c0_i32_0 : i32, i32
  }
  func.func @transform_6(%arg0: i32) -> (i32, i32) {
    %c0_i32 = arith.constant 0 : i32
    %c0_i32_0 = arith.constant 0 : i32
    %c0_i32_1 = arith.constant 0 : i32
    return %c0_i32, %c0_i32_0 : i32, i32
  }
  func.func @transform_7(%arg0: i32) -> (i32, i32) {
    %c0_i32 = arith.constant 0 : i32
    %c0_i32_0 = arith.constant 0 : i32
    %c0_i32_1 = arith.constant 0 : i32
    return %c0_i32, %c0_i32_0 : i32, i32
  }
  func.func @transform_8(%arg0: i32) -> (i32, i32) {
    %c0_i32 = arith.constant 0 : i32
    %c0_i32_0 = arith.constant 0 : i32
    %c0_i32_1 = arith.constant 0 : i32
    return %c0_i32, %c0_i32_0 : i32, i32
  }
  func.func @transform_9(%arg0: i32) -> (i32, i32) {
    %c0_i32 = arith.constant 0 : i32
    %c0_i32_0 = arith.constant 0 : i32
    return %c0_i32, %arg0 : i32, i32
  }
}

</mosaic_0001>

<llo_original>
// kernel: tpu_custom_call.1
$region0: #{tpu_custom_call.1}
  #allocation0 [shape = 'u32[]', space=smem, size = 0x4, offset = 0x4, fixed_abs, tag = 'smem constant byte address 0x4 - core index']
  #allocation1 [shape = 'u32[144,128]{1,0:T(1,128)}', space=vmem, size = 0x12000, scoped, tag = 'internal scratch']
  #allocation2 [shape = 'f32[1,1]{1,0:T(1,128)S(6)}', space=smem, size = 0x200, scoped, tag = 'scoped memory for tpu_custom_call.1']
  %s0 = inlined_call_operand.hbm [shape: bf16[8,128], index: 0, kind: input, shape index: {}]
  %s1 = inlined_call_operand.hbm [shape: bf16[128,512], index: 1, kind: input, shape index: {}]
  %s2 = inlined_call_operand.vmem [shape: f32[1,512], index: 2, kind: input, shape index: {}]
  %s3 = inlined_call_operand.hbm [shape: bf16[512,256], index: 3, kind: input, shape index: {}]
  %s4 = inlined_call_operand.vmem [shape: f32[1,256], index: 4, kind: input, shape index: {}]
  %s5 = inlined_call_operand.hbm [shape: bf16[256,128], index: 5, kind: input, shape index: {}]
  %s6 = inlined_call_operand.vmem [shape: f32[1,128], index: 6, kind: input, shape index: {}]
  %s7 = inlined_call_operand.vmem [shape: f32[8,128], index: 7, kind: input, shape index: {}]
  %s8 = inlined_call_operand.<no memory space> [shape: f32[1,1], index: 8, kind: input, shape index: {}]
  %s9 = inlined_call_operand.hbm [shape: f32[1,8], index: 9, kind: output, shape index: {}]
  %s10 = sld [smem:[#allocation0]]
  $region62: #{tpu_custom_call.1} parent=0
    _
  %s12 = ssub.s32 1, %s10
  %s13 = scalar_select 0, %s12, %s10
  %14 = sst [smem:[#allocation2]] %s8
  $region1: #{tpu_custom_call.1} parent=0
    #allocation3 [shape = 'u8[2048]{0}', space=vmem, size = 0x800, scoped, tag = 'input window, operand 0, single buffered']
    #allocation4 [shape = 's32[1]{0}', space=sflag, size = 0x4, scoped, tag = 'scoped memory for tpu_custom_call.1']
    #allocation5 [shape = 's32[1]{0}', space=sflag, size = 0x4, scoped, tag = 'scoped memory for tpu_custom_call.1']
    #allocation6 [shape = 'u8[131072]{0}', space=vmem, size = 0x20000, scoped, tag = 'input window, operand 1, single buffered']
    #allocation7 [shape = 's32[1]{0}', space=sflag, size = 0x4, scoped, tag = 'scoped memory for tpu_custom_call.1']
    #allocation8 [shape = 'u8[262144]{0}', space=vmem, size = 0x40000, scoped, tag = 'input window, operand 3, single buffered']
    #allocation9 [shape = 'u8[65536]{0}', space=vmem, size = 0x10000, scoped, tag = 'input window, operand 5, single buffered']
    #allocation10 [shape = 's32[1]{0}', space=sflag, size = 0x4, scoped, tag = 'scoped memory for tpu_custom_call.1']
    #allocation11 [shape = 'u8[512]{0}', space=vmem, size = 0x400, scoped, tag = 'output window, operand 0, single buffered']
    %15 = vsyncpa [#allocation4], 0
    %16 = vsyncpa [#allocation7], 0
    %17 = vsyncpa [#allocation10], 0
    %18 = vsyncpa [#allocation5], 0
    // Predicated region
    $region2: #{tpu_custom_call.1} parent=1 // pred_check
      _
    $region3: #{tpu_custom_call.1} parent=1 // pred_check_branch
      %20 = sbr.rel (0) target = $region5
    $region4: #{tpu_custom_call.1} parent=1 // pred_region
      %s22 = ssub.s32 64, 64
      %23 = vsyncadd [#allocation4], %s22
      %s25 = sshll.u32 [#allocation3], 4
      %s26 = int_to_ptr.vmem [resolvable:$true] %s25
      %28 = dma.hbm_to_vmem [thread:$0]  %s0, 64, %s26, [#allocation4]
    $region5: #{tpu_custom_call.1} parent=1 // pred_fallthru
      _
    // Predicated region
    $region6: #{tpu_custom_call.1} parent=1 // pred_check
      _
    $region7: #{tpu_custom_call.1} parent=1 // pred_check_branch
      %30 = sbr.rel (0) target = $region9
    $region8: #{tpu_custom_call.1} parent=1 // pred_region
      %s32 = ssub.s32 4096, 4096
      %33 = vsyncadd [#allocation7], %s32
      %s34 = sshll.u32 [#allocation6], 4
      %s35 = int_to_ptr.vmem [resolvable:$true] %s34
      %40 = dma.hbm_to_vmem [thread:$0]  %s1, 4096, %s35, [#allocation7], 256, 256, 16
    $region9: #{tpu_custom_call.1} parent=1 // pred_fallthru
      _
    // Predicated region
    $region10: #{tpu_custom_call.1} parent=1 // pred_check
      _
    $region11: #{tpu_custom_call.1} parent=1 // pred_check_branch
      %42 = sbr.rel (0) target = $region13
    $region12: #{tpu_custom_call.1} parent=1 // pred_region
      _
    $region13: #{tpu_custom_call.1} parent=1 // pred_fallthru
      _
    // Predicated region
    $region14: #{tpu_custom_call.1} parent=1 // pred_check
      _
    $region15: #{tpu_custom_call.1} parent=1 // pred_check_branch
      %44 = sbr.rel (0) target = $region17
    $region16: #{tpu_custom_call.1} parent=1 // pred_region
      %s46 = ssub.s32 8192, 8192
      %47 = vsyncadd [#allocation7], %s46
      %s48 = sshll.u32 [#allocation8], 4
      %s49 = int_to_ptr.vmem [resolvable:$true] %s48
      %54 = dma.hbm_to_vmem [thread:$0]  %s3, 8192, %s49, [#allocation7], 128, 128, 8
    $region17: #{tpu_custom_call.1} parent=1 // pred_fallthru
      _
    // Predicated region
    $region18: #{tpu_custom_call.1} parent=1 // pred_check
      _
    $region19: #{tpu_custom_call.1} parent=1 // pred_check_branch
      %56 = sbr.rel (0) target = $region21
    $region20: #{tpu_custom_call.1} parent=1 // pred_region
      _
    $region21: #{tpu_custom_call.1} parent=1 // pred_fallthru
      _
    // Predicated region
    $region22: #{tpu_custom_call.1} parent=1 // pred_check
      _
    $region23: #{tpu_custom_call.1} parent=1 // pred_check_branch
      %58 = sbr.rel (0) target = $region25
    $region24: #{tpu_custom_call.1} parent=1 // pred_region
      %s60 = ssub.s32 2048, 2048
      %61 = vsyncadd [#allocation10], %s60
      %s62 = sshll.u32 [#allocation9], 4
      %s63 = int_to_ptr.vmem [resolvable:$true] %s62
      %68 = dma.hbm_to_vmem [thread:$0]  %s5, 2048, %s63, [#allocation10], 64, 64, 4
    $region25: #{tpu_custom_call.1} parent=1 // pred_fallthru
      _
    // Predicated region
    $region26: #{tpu_custom_call.1} parent=1 // pred_check
      _
    $region27: #{tpu_custom_call.1} parent=1 // pred_check_branch
      %70 = sbr.rel (0) target = $region29
    $region28: #{tpu_custom_call.1} parent=1 // pred_region
      _
    $region29: #{tpu_custom_call.1} parent=1 // pred_fallthru
      _
    // Predicated region
    $region30: #{tpu_custom_call.1} parent=1 // pred_check
      _
    $region31: #{tpu_custom_call.1} parent=1 // pred_check_branch
      %72 = sbr.rel (0) target = $region33
    $region32: #{tpu_custom_call.1} parent=1 // pred_region
      _
    $region33: #{tpu_custom_call.1} parent=1 // pred_fallthru
      _
    // Predicated region
    $region34: #{tpu_custom_call.1} parent=1 // pred_check
      _
    $region35: #{tpu_custom_call.1} parent=1 // pred_check_branch
      %74 = sbr.rel (0) target = $region37
    $region36: #{tpu_custom_call.1} parent=1 // pred_region
      _
    $region37: #{tpu_custom_call.1} parent=1 // pred_fallthru
      _
    // Predicated region
    $region38: #{tpu_custom_call.1} parent=1 // pred_check
      _
    $region39: #{tpu_custom_call.1} parent=1 // pred_check_branch
      %76 = sbr.rel (0) target = $region41
    $region40: #{tpu_custom_call.1} parent=1 // pred_region
      %77 = dma.done [#allocation4], 64
    $region41: #{tpu_custom_call.1} parent=1 // pred_fallthru
      _
    // Predicated region
    $region42: #{tpu_custom_call.1} parent=1 // pred_check
      _
    $region43: #{tpu_custom_call.1} parent=1 // pred_check_branch
      %79 = sbr.rel (0) target = $region45
    $region44: #{tpu_custom_call.1} parent=1 // pred_region
      %80 = dma.done [#allocation7], 4096
    $region45: #{tpu_custom_call.1} parent=1 // pred_fallthru
      _
    // Predicated region
    $region46: #{tpu_custom_call.1} parent=1 // pred_check
      _
    $region47: #{tpu_custom_call.1} parent=1 // pred_check_branch
      %82 = sbr.rel (0) target = $region49
    $region48: #{tpu_custom_call.1} parent=1 // pred_region
      %83 = dma.done [#allocation7], 8192
    $region49: #{tpu_custom_call.1} parent=1 // pred_fallthru
      _
    // Predicated region
    $region50: #{tpu_custom_call.1} parent=1 // pred_check
      _
    $region51: #{tpu_custom_call.1} parent=1 // pred_check_branch
      %85 = sbr.rel (0) target = $region53
    $region52: #{tpu_custom_call.1} parent=1 // pred_region
      %86 = dma.done [#allocation10], 2048
    $region53: #{tpu_custom_call.1} parent=1 // pred_fallthru
      _
    %v88 = vld [vmem:[#allocation3] sm:$0xf]
    %v89 = vld [vmem:[#allocation6] sm:$0xff]
    %v90 = vld [vmem:[#allocation6 + $0x8] sm:$0xff]
    %v91 = vld [vmem:[#allocation6 + $0x10] sm:$0xff]
    %v92 = vld [vmem:[#allocation6 + $0x18] sm:$0xff]
    %v93 = vld [vmem:[#allocation6 + $0x20] sm:$0xff]
    %v94 = vld [vmem:[#allocation6 + $0x28] sm:$0xff]
    %v95 = vld [vmem:[#allocation6 + $0x30] sm:$0xff]
    %v96 = vld [vmem:[#allocation6 + $0x38] sm:$0xff]
    %v97 = vld [vmem:[#allocation6 + $0x40] sm:$0xff]
    %v98 = vld [vmem:[#allocation6 + $0x48] sm:$0xff]
    %v99 = vld [vmem:[#allocation6 + $0x50] sm:$0xff]
    %v100 = vld [vmem:[#allocation6 + $0x58] sm:$0xff]
    %v101 = vld [vmem:[#allocation6 + $0x60] sm:$0xff]
    %v102 = vld [vmem:[#allocation6 + $0x68] sm:$0xff]
    %v103 = vld [vmem:[#allocation6 + $0x70] sm:$0xff]
    %v104 = vld [vmem:[#allocation6 + $0x78] sm:$0xff]
    %v105 = vld [vmem:[#allocation6 + $0x80] sm:$0xff]
    %v106 = vld [vmem:[#allocation6 + $0x88] sm:$0xff]
    %v107 = vld [vmem:[#allocation6 + $0x90] sm:$0xff]
    %v108 = vld [vmem:[#allocation6 + $0x98] sm:$0xff]
    %v109 = vld [vmem:[#allocation6 + $0xa0] sm:$0xff]
    %v110 = vld [vmem:[#allocation6 + $0xa8] sm:$0xff]
    %v111 = vld [vmem:[#allocation6 + $0xb0] sm:$0xff]
    %v112 = vld [vmem:[#allocation6 + $0xb8] sm:$0xff]
    %v113 = vld [vmem:[#allocation6 + $0xc0] sm:$0xff]
    %v114 = vld [vmem:[#allocation6 + $0xc8] sm:$0xff]
    %v115 = vld [vmem:[#allocation6 + $0xd0] sm:$0xff]
    %v116 = vld [vmem:[#allocation6 + $0xd8] sm:$0xff]
    %v117 = vld [vmem:[#allocation6 + $0xe0] sm:$0xff]
    %v118 = vld [vmem:[#allocation6 + $0xe8] sm:$0xff]
    %v119 = vld [vmem:[#allocation6 + $0xf0] sm:$0xff]
    %v120 = vld [vmem:[#allocation6 + $0xf8] sm:$0xff]
    %v121 = vld [vmem:[%s2] sm:$0xf]
    %v123 = vlaneseq
    %v124 = vshrl.u32 %v123, 7
    %v125 = vsub.s32 0, %v124
    %v126 = vrot.slane %v121, %v125
    %v127 = vlaneseq
    %v128 = vshrl.u32 %v127, 7
    %v129 = vsub.s32 1, %v128
    %v130 = vrot.slane %v121, %v129
    %v131 = vlaneseq
    %v132 = vshrl.u32 %v131, 7
    %v133 = vsub.s32 2, %v132
    %v134 = vrot.slane %v121, %v133
    %v135 = vlaneseq
    %v136 = vshrl.u32 %v135, 7
    %v137 = vsub.s32 3, %v136
    %v138 = vrot.slane %v121, %v137
    %v175 = vunpack.c.l.b16 %v89
    %v176 = vunpack.c.h.b16 %v89
    %v177 = vunpack.c.l.b16 %v90
    %v178 = vunpack.c.h.b16 %v90
    %v179 = vunpack.c.l.b16 %v91
    %v180 = vunpack.c.h.b16 %v91
    %v181 = vunpack.c.l.b16 %v92
    %v182 = vunpack.c.h.b16 %v92
    %v183 = vunpack.c.l.b16 %v93
    %v184 = vunpack.c.h.b16 %v93
    %v185 = vunpack.c.l.b16 %v94
    %v186 = vunpack.c.h.b16 %v94
    %v187 = vunpack.c.l.b16 %v95
    %v188 = vunpack.c.h.b16 %v95
    %v189 = vunpack.c.l.b16 %v96
    %v190 = vunpack.c.h.b16 %v96
    %v191 = vunpack.c.l.b16 %v97
    %v192 = vunpack.c.h.b16 %v97
    %v193 = vunpack.c.l.b16 %v98
    %v194 = vunpack.c.h.b16 %v98
    %v195 = vunpack.c.l.b16 %v99
    %v196 = vunpack.c.h.b16 %v99
    %v197 = vunpack.c.l.b16 %v100
    %v198 = vunpack.c.h.b16 %v100
    %v199 = vunpack.c.l.b16 %v101
    %v200 = vunpack.c.h.b16 %v101
    %v201 = vunpack.c.l.b16 %v102
    %v202 = vunpack.c.h.b16 %v102
    %v203 = vunpack.c.l.b16 %v103
    %v204 = vunpack.c.h.b16 %v103
    %v205 = vunpack.c.l.b16 %v104
    %v206 = vunpack.c.h.b16 %v104
    %v207 = vunpack.c.l.b16 %v105
    %v208 = vunpack.c.h.b16 %v105
    %v209 = vunpack.c.l.b16 %v106
    %v210 = vunpack.c.h.b16 %v106
    %v211 = vunpack.c.l.b16 %v107
    %v212 = vunpack.c.h.b16 %v107
    %v213 = vunpack.c.l.b16 %v108
    %v214 = vunpack.c.h.b16 %v108
    %v215 = vunpack.c.l.b16 %v109
    %v216 = vunpack.c.h.b16 %v109
    %v217 = vunpack.c.l.b16 %v110
    %v218 = vunpack.c.h.b16 %v110
    %v219 = vunpack.c.l.b16 %v111
    %v220 = vunpack.c.h.b16 %v111
    %v221 = vunpack.c.l.b16 %v112
    %v222 = vunpack.c.h.b16 %v112
    %v223 = vunpack.c.l.b16 %v113
    %v224 = vunpack.c.h.b16 %v113
    %v225 = vunpack.c.l.b16 %v114
    %v226 = vunpack.c.h.b16 %v114
    %v227 = vunpack.c.l.b16 %v115
    %v228 = vunpack.c.h.b16 %v115
    %v229 = vunpack.c.l.b16 %v116
    %v230 = vunpack.c.h.b16 %v116
    %v231 = vunpack.c.l.b16 %v117
    %v232 = vunpack.c.h.b16 %v117
    %v233 = vunpack.c.l.b16 %v118
    %v234 = vunpack.c.h.b16 %v118
    %v235 = vunpack.c.l.b16 %v119
    %v236 = vunpack.c.h.b16 %v119
    %v237 = vunpack.c.l.b16 %v120
    %v238 = vunpack.c.h.b16 %v120
    %v239 = vpack.c.b16 %v179, %v175
    %v240 = vpack.c.b16 %v180, %v176
    %v241 = vpack.c.b16 %v181, %v177
    %v242 = vpack.c.b16 %v182, %v178
    %v243 = vpack.c.b16 %v187, %v183
    %v244 = vpack.c.b16 %v188, %v184
    %v245 = vpack.c.b16 %v189, %v185
    %v246 = vpack.c.b16 %v190, %v186
    %v247 = vpack.c.b16 %v195, %v191
    %v248 = vpack.c.b16 %v196, %v192
    %v249 = vpack.c.b16 %v197, %v193
    %v250 = vpack.c.b16 %v198, %v194
    %v251 = vpack.c.b16 %v203, %v199
    %v252 = vpack.c.b16 %v204, %v200
    %v253 = vpack.c.b16 %v205, %v201
    %v254 = vpack.c.b16 %v206, %v202
    %v255 = vpack.c.b16 %v211, %v207
    %v256 = vpack.c.b16 %v212, %v208
    %v257 = vpack.c.b16 %v213, %v209
    %v258 = vpack.c.b16 %v214, %v210
    %v259 = vpack.c.b16 %v219, %v215
    %v260 = vpack.c.b16 %v220, %v216
    %v261 = vpack.c.b16 %v221, %v217
    %v262 = vpack.c.b16 %v222, %v218
    %v263 = vpack.c.b16 %v227, %v223
    %v264 = vpack.c.b16 %v228, %v224
    %v265 = vpack.c.b16 %v229, %v225
    %v266 = vpack.c.b16 %v230, %v226
    %v267 = vpack.c.b16 %v235, %v231
    %v268 = vpack.c.b16 %v236, %v232
    %v269 = vpack.c.b16 %v237, %v233
    %v270 = vpack.c.b16 %v238, %v234
    %303 = vmatprep.subr.bf16.mxu0 %v240
    %304 = vmatpush1.bf16.msra.mxu0 %v239
    %305 = vmatprep.subr.bf16.mxu0 %v244
    %306 = vmatpush1.bf16.msra.mxu0 %v243
    %307 = vmatprep.subr.bf16.mxu0 %v248
    %308 = vmatpush1.bf16.msra.mxu0 %v247
    %309 = vmatprep.subr.bf16.mxu0 %v252
    %310 = vmatpush1.bf16.msra.mxu0 %v251
    %311 = vmatprep.subr.bf16.mxu0 %v256
    %312 = vmatpush1.bf16.msra.mxu0 %v255
    %313 = vmatprep.subr.bf16.mxu0 %v260
    %314 = vmatpush1.bf16.msra.mxu0 %v259
    %315 = vmatprep.subr.bf16.mxu0 %v264
    %316 = vmatpush1.bf16.msra.mxu0 %v263
    %317 = vmatprep.subr.bf16.mxu0 %v268
    %318 = vmatpush1.bf16.msra.mxu0 %v267
    %319 = vmatprep.subr.bf16.mxu0 0
    %320 = vmatpush1.bf16.msra.mxu0 0
    %321 = vmatprep.subr.bf16.mxu0 0
    %322 = vmatpush1.bf16.msra.mxu0 0
    %323 = vmatprep.subr.bf16.mxu0 0
    %324 = vmatpush1.bf16.msra.mxu0 0
    %325 = vmatprep.subr.bf16.mxu0 0
    %326 = vmatpush1.bf16.msra.mxu0 0
    %327 = vmatprep.subr.bf16.mxu0 0
    %328 = vmatpush1.bf16.msra.mxu0 0
    %329 = vmatprep.subr.bf16.mxu0 0
    %330 = vmatpush1.bf16.msra.mxu0 0
    %331 = vmatprep.subr.bf16.mxu0 0
    %332 = vmatpush1.bf16.msra.mxu0 0
    %333 = vmatprep.subr.bf16.mxu0 0
    %334 = vmatpush1.bf16.msra.mxu0 0
    %335 = vmatprep.mubr.bf16.mxu0 0
    %336 = vmatmul.mubr.bf16.gmra.mrb[0].mxu0 %v88
    %v337 = vpop.f32.mrb[0].mxu0
    %v338 = vadd.f32 %v126, %v337
    %v339 = vpop.f32.mrb[0].mxu0
    %v340 = vadd.f32 %v130, %v339
    %v341 = vpop.f32.mrb[0].mxu0
    %v342 = vpop.f32.mrb[0].mxu0
    %343 = vdwg.mxu0
    %344 = vmatprep.subr.bf16.mxu0 %v242
    %345 = vmatpush1.bf16.msra.mxu0 %v241
    %346 = vmatprep.subr.bf16.mxu0 %v246
    %347 = vmatpush1.bf16.msra.mxu0 %v245
    %348 = vmatprep.subr.bf16.mxu0 %v250
    %349 = vmatpush1.bf16.msra.mxu0 %v249
    %350 = vmatprep.subr.bf16.mxu0 %v254
    %351 = vmatpush1.bf16.msra.mxu0 %v253
    %352 = vmatprep.subr.bf16.mxu0 %v258
    %353 = vmatpush1.bf16.msra.mxu0 %v257
    %354 = vmatprep.subr.bf16.mxu0 %v262
    %355 = vmatpush1.bf16.msra.mxu0 %v261
    %356 = vmatprep.subr.bf16.mxu0 %v266
    %357 = vmatpush1.bf16.msra.mxu0 %v265
    %358 = vmatprep.subr.bf16.mxu0 %v270
    %359 = vmatpush1.bf16.msra.mxu0 %v269
    %360 = vmatprep.subr.bf16.mxu0 0
    %361 = vmatpush1.bf16.msra.mxu0 0
    %362 = vmatprep.subr.bf16.mxu0 0
    %363 = vmatpush1.bf16.msra.mxu0 0
    %364 = vmatprep.subr.bf16.mxu0 0
    %365 = vmatpush1.bf16.msra.mxu0 0
    %366 = vmatprep.subr.bf16.mxu0 0
    %367 = vmatpush1.bf16.msra.mxu0 0
    %368 = vmatprep.subr.bf16.mxu0 0
    %369 = vmatpush1.bf16.msra.mxu0 0
    %370 = vmatprep.subr.bf16.mxu0 0
    %371 = vmatpush1.bf16.msra.mxu0 0
    %372 = vmatprep.subr.bf16.mxu0 0
    %373 = vmatpush1.bf16.msra.mxu0 0
    %374 = vmatprep.subr.bf16.mxu0 0
    %375 = vmatpush1.bf16.msra.mxu0 0
    %376 = vmatprep.mubr.bf16.mxu0 0
    %377 = vmatmul.mubr.bf16.gmra.mrb[0].mxu0 %v88
    %v378 = vpop.f32.mrb[0].mxu0
    %v379 = vadd.f32 %v134, %v378
    %v380 = vpop.f32.mrb[0].mxu0
    %v381 = vadd.f32 %v138, %v380
    %v382 = vpop.f32.mrb[0].mxu0
    %v383 = vpop.f32.mrb[0].mxu0
    %384 = vdwg.mxu0
    %v385 = vmax.f32 %v338, 0.0
    %v386 = vmax.f32 %v340, 0.0
    %v387 = vmax.f32 %v379, 0.0
    %v388 = vmax.f32 %v381, 0.0
    %v389 = vpack.c.bf16 %v385, %v385
    %v390 = vpack.c.bf16 %v386, %v386
    %v391 = vpack.c.bf16 %v387, %v387
    %v392 = vpack.c.bf16 %v388, %v388
    %v393 = vld [vmem:[#allocation8] sm:$0xff]
    %v394 = vld [vmem:[#allocation8 + $0x8] sm:$0xff]
    %v395 = vld [vmem:[#allocation8 + $0x10] sm:$0xff]
    %v396 = vld [vmem:[#allocation8 + $0x18] sm:$0xff]
    %v397 = vld [vmem:[#allocation8 + $0x20] sm:$0xff]
    %v398 = vld [vmem:[#allocation8 + $0x28] sm:$0xff]
    %v399 = vld [vmem:[#allocation8 + $0x30] sm:$0xff]
    %v400 = vld [vmem:[#allocation8 + $0x38] sm:$0xff]
    %v401 = vld [vmem:[#allocation8 + $0x40] sm:$0xff]
    %v402 = vld [vmem:[#allocation8 + $0x48] sm:$0xff]
    %v403 = vld [vmem:[#allocation8 + $0x50] sm:$0xff]
    %v404 = vld [vmem:[#allocation8 + $0x58] sm:$0xff]
    %v405 = vld [vmem:[#allocation8 + $0x60] sm:$0xff]
    %v406 = vld [vmem:[#allocation8 + $0x68] sm:$0xff]
    %v407 = vld [vmem:[#allocation8 + $0x70] sm:$0xff]
    %v408 = vld [vmem:[#allocation8 + $0x78] sm:$0xff]
    %v409 = vld [vmem:[#allocation8 + $0x80] sm:$0xff]
    %v410 = vld [vmem:[#allocation8 + $0x88] sm:$0xff]
    %v411 = vld [vmem:[#allocation8 + $0x90] sm:$0xff]
    %v412 = vld [vmem:[#allocation8 + $0x98] sm:$0xff]
    %v413 = vld [vmem:[#allocation8 + $0xa0] sm:$0xff]
    %v414 = vld [vmem:[#allocation8 + $0xa8] sm:$0xff]
    %v415 = vld [vmem:[#allocation8 + $0xb0] sm:$0xff]
    %v416 = vld [vmem:[#allocation8 + $0xb8] sm:$0xff]
    %v417 = vld [vmem:[#allocation8 + $0xc0] sm:$0xff]
    %v418 = vld [vmem:[#allocation8 + $0xc8] sm:$0xff]
    %v419 = vld [vmem:[#allocation8 + $0xd0] sm:$0xff]
    %v420 = vld [vmem:[#allocation8 + $0xd8] sm:$0xff]
    %v421 = vld [vmem:[#allocation8 + $0xe0] sm:$0xff]
    %v422 = vld [vmem:[#allocation8 + $0xe8] sm:$0xff]
    %v423 = vld [vmem:[#allocation8 + $0xf0] sm:$0xff]
    %v424 = vld [vmem:[#allocation8 + $0xf8] sm:$0xff]
    %v425 = vld [vmem:[#allocation8 + $0x100] sm:$0xff]
    %v426 = vld [vmem:[#allocation8 + $0x108] sm:$0xff]
    %v427 = vld [vmem:[#allocation8 + $0x110] sm:$0xff]
    %v428 = vld [vmem:[#allocation8 + $0x118] sm:$0xff]
    %v429 = vld [vmem:[#allocation8 + $0x120] sm:$0xff]
    %v430 = vld [vmem:[#allocation8 + $0x128] sm:$0xff]
    %v431 = vld [vmem:[#allocation8 + $0x130] sm:$0xff]
    %v432 = vld [vmem:[#allocation8 + $0x138] sm:$0xff]
    %v433 = vld [vmem:[#allocation8 + $0x140] sm:$0xff]
    %v434 = vld [vmem:[#allocation8 + $0x148] sm:$0xff]
    %v435 = vld [vmem:[#allocation8 + $0x150] sm:$0xff]
    %v436 = vld [vmem:[#allocation8 + $0x158] sm:$0xff]
    %v437 = vld [vmem:[#allocation8 + $0x160] sm:$0xff]
    %v438 = vld [vmem:[#allocation8 + $0x168] sm:$0xff]
    %v439 = vld [vmem:[#allocation8 + $0x170] sm:$0xff]
    %v440 = vld [vmem:[#allocation8 + $0x178] sm:$0xff]
    %v441 = vld [vmem:[#allocation8 + $0x180] sm:$0xff]
    %v442 = vld [vmem:[#allocation8 + $0x188] sm:$0xff]
    %v443 = vld [vmem:[#allocation8 + $0x190] sm:$0xff]
    %v444 = vld [vmem:[#allocation8 + $0x198] sm:$0xff]
    %v445 = vld [vmem:[#allocation8 + $0x1a0] sm:$0xff]
    %v446 = vld [vmem:[#allocation8 + $0x1a8] sm:$0xff]
    %v447 = vld [vmem:[#allocation8 + $0x1b0] sm:$0xff]
    %v448 = vld [vmem:[#allocation8 + $0x1b8] sm:$0xff]
    %v449 = vld [vmem:[#allocation8 + $0x1c0] sm:$0xff]
    %v450 = vld [vmem:[#allocation8 + $0x1c8] sm:$0xff]
    %v451 = vld [vmem:[#allocation8 + $0x1d0] sm:$0xff]
    %v452 = vld [vmem:[#allocation8 + $0x1d8] sm:$0xff]
    %v453 = vld [vmem:[#allocation8 + $0x1e0] sm:$0xff]
    %v454 = vld [vmem:[#allocation8 + $0x1e8] sm:$0xff]
    %v455 = vld [vmem:[#allocation8 + $0x1f0] sm:$0xff]
    %v456 = vld [vmem:[#allocation8 + $0x1f8] sm:$0xff]
    %v457 = vld [vmem:[%s4] sm:$0x3]
    %v459 = vlaneseq
    %v460 = vshrl.u32 %v459, 7
    %v461 = vsub.s32 0, %v460
    %v462 = vrot.slane %v457, %v461
    %v463 = vlaneseq
    %v464 = vshrl.u32 %v463, 7
    %v465 = vsub.s32 1, %v464
    %v466 = vrot.slane %v457, %v465
    %v533 = vunpack.c.l.b16 %v393
    %v534 = vunpack.c.h.b16 %v393
    %v535 = vunpack.c.l.b16 %v394
    %v536 = vunpack.c.h.b16 %v394
    %v537 = vunpack.c.l.b16 %v395
    %v538 = vunpack.c.h.b16 %v395
    %v539 = vunpack.c.l.b16 %v396
    %v540 = vunpack.c.h.b16 %v396
    %v541 = vunpack.c.l.b16 %v397
    %v542 = vunpack.c.h.b16 %v397
    %v543 = vunpack.c.l.b16 %v398
    %v544 = vunpack.c.h.b16 %v398
    %v545 = vunpack.c.l.b16 %v399
    %v546 = vunpack.c.h.b16 %v399
    %v547 = vunpack.c.l.b16 %v400
    %v548 = vunpack.c.h.b16 %v400
    %v549 = vunpack.c.l.b16 %v401
    %v550 = vunpack.c.h.b16 %v401
    %v551 = vunpack.c.l.b16 %v402
    %v552 = vunpack.c.h.b16 %v402
    %v553 = vunpack.c.l.b16 %v403
    %v554 = vunpack.c.h.b16 %v403
    %v555 = vunpack.c.l.b16 %v404
    %v556 = vunpack.c.h.b16 %v404
    %v557 = vunpack.c.l.b16 %v405
    %v558 = vunpack.c.h.b16 %v405
    %v559 = vunpack.c.l.b16 %v406
    %v560 = vunpack.c.h.b16 %v406
    %v561 = vunpack.c.l.b16 %v407
    %v562 = vunpack.c.h.b16 %v407
    %v563 = vunpack.c.l.b16 %v408
    %v564 = vunpack.c.h.b16 %v408
    %v565 = vunpack.c.l.b16 %v409
    %v566 = vunpack.c.h.b16 %v409
    %v567 = vunpack.c.l.b16 %v410
    %v568 = vunpack.c.h.b16 %v410
    %v569 = vunpack.c.l.b16 %v411
    %v570 = vunpack.c.h.b16 %v411
    %v571 = vunpack.c.l.b16 %v412
    %v572 = vunpack.c.h.b16 %v412
    %v573 = vunpack.c.l.b16 %v413
    %v574 = vunpack.c.h.b16 %v413
    %v575 = vunpack.c.l.b16 %v414
    %v576 = vunpack.c.h.b16 %v414
    %v577 = vunpack.c.l.b16 %v415
    %v578 = vunpack.c.h.b16 %v415
    %v579 = vunpack.c.l.b16 %v416
    %v580 = vunpack.c.h.b16 %v416
    %v581 = vunpack.c.l.b16 %v417
    %v582 = vunpack.c.h.b16 %v417
    %v583 = vunpack.c.l.b16 %v418
    %v584 = vunpack.c.h.b16 %v418
    %v585 = vunpack.c.l.b16 %v419
    %v586 = vunpack.c.h.b16 %v419
    %v587 = vunpack.c.l.b16 %v420
    %v588 = vunpack.c.h.b16 %v420
    %v589 = vunpack.c.l.b16 %v421
    %v590 = vunpack.c.h.b16 %v421
    %v591 = vunpack.c.l.b16 %v422
    %v592 = vunpack.c.h.b16 %v422
    %v593 = vunpack.c.l.b16 %v423
    %v594 = vunpack.c.h.b16 %v423
    %v595 = vunpack.c.l.b16 %v424
    %v596 = vunpack.c.h.b16 %v424
    %v597 = vunpack.c.l.b16 %v425
    %v598 = vunpack.c.h.b16 %v425
    %v599 = vunpack.c.l.b16 %v426
    %v600 = vunpack.c.h.b16 %v426
    %v601 = vunpack.c.l.b16 %v427
    %v602 = vunpack.c.h.b16 %v427
    %v603 = vunpack.c.l.b16 %v428
    %v604 = vunpack.c.h.b16 %v428
    %v605 = vunpack.c.l.b16 %v429
    %v606 = vunpack.c.h.b16 %v429
    %v607 = vunpack.c.l.b16 %v430
    %v608 = vunpack.c.h.b16 %v430
    %v609 = vunpack.c.l.b16 %v431
    %v610 = vunpack.c.h.b16 %v431
    %v611 = vunpack.c.l.b16 %v432
    %v612 = vunpack.c.h.b16 %v432
    %v613 = vunpack.c.l.b16 %v433
    %v614 = vunpack.c.h.b16 %v433
    %v615 = vunpack.c.l.b16 %v434
    %v616 = vunpack.c.h.b16 %v434
    %v617 = vunpack.c.l.b16 %v435
    %v618 = vunpack.c.h.b16 %v435
    %v619 = vunpack.c.l.b16 %v436
    %v620 = vunpack.c.h.b16 %v436
    %v621 = vunpack.c.l.b16 %v437
    %v622 = vunpack.c.h.b16 %v437
    %v623 = vunpack.c.l.b16 %v438
    %v624 = vunpack.c.h.b16 %v438
    %v625 = vunpack.c.l.b16 %v439
    %v626 = vunpack.c.h.b16 %v439
    %v627 = vunpack.c.l.b16 %v440
    %v628 = vunpack.c.h.b16 %v440
    %v629 = vunpack.c.l.b16 %v441
    %v630 = vunpack.c.h.b16 %v441
    %v631 = vunpack.c.l.b16 %v442
    %v632 = vunpack.c.h.b16 %v442
    %v633 = vunpack.c.l.b16 %v443
    %v634 = vunpack.c.h.b16 %v443
    %v635 = vunpack.c.l.b16 %v444
    %v636 = vunpack.c.h.b16 %v444
    %v637 = vunpack.c.l.b16 %v445
    %v638 = vunpack.c.h.b16 %v445
    %v639 = vunpack.c.l.b16 %v446
    %v640 = vunpack.c.h.b16 %v446
    %v641 = vunpack.c.l.b16 %v447
    %v642 = vunpack.c.h.b16 %v447
    %v643 = vunpack.c.l.b16 %v448
    %v644 = vunpack.c.h.b16 %v448
    %v645 = vunpack.c.l.b16 %v449
    %v646 = vunpack.c.h.b16 %v449
    %v647 = vunpack.c.l.b16 %v450
    %v648 = vunpack.c.h.b16 %v450
    %v649 = vunpack.c.l.b16 %v451
    %v650 = vunpack.c.h.b16 %v451
    %v651 = vunpack.c.l.b16 %v452
    %v652 = vunpack.c.h.b16 %v452
    %v653 = vunpack.c.l.b16 %v453
    %v654 = vunpack.c.h.b16 %v453
    %v655 = vunpack.c.l.b16 %v454
    %v656 = vunpack.c.h.b16 %v454
    %v657 = vunpack.c.l.b16 %v455
    %v658 = vunpack.c.h.b16 %v455
    %v659 = vunpack.c.l.b16 %v456
    %v660 = vunpack.c.h.b16 %v456
    %v661 = vpack.c.b16 %v535, %v533
    %v662 = vpack.c.b16 %v536, %v534
    %v663 = vpack.c.b16 %v539, %v537
    %v664 = vpack.c.b16 %v540, %v538
    %v665 = vpack.c.b16 %v543, %v541
    %v666 = vpack.c.b16 %v544, %v542
    %v667 = vpack.c.b16 %v547, %v545
    %v668 = vpack.c.b16 %v548, %v546
    %v669 = vpack.c.b16 %v551, %v549
    %v670 = vpack.c.b16 %v552, %v550
    %v671 = vpack.c.b16 %v555, %v553
    %v672 = vpack.c.b16 %v556, %v554
    %v673 = vpack.c.b16 %v559, %v557
    %v674 = vpack.c.b16 %v560, %v558
    %v675 = vpack.c.b16 %v563, %v561
    %v676 = vpack.c.b16 %v564, %v562
    %v677 = vpack.c.b16 %v567, %v565
    %v678 = vpack.c.b16 %v568, %v566
    %v679 = vpack.c.b16 %v571, %v569
    %v680 = vpack.c.b16 %v572, %v570
    %v681 = vpack.c.b16 %v575, %v573
    %v682 = vpack.c.b16 %v576, %v574
    %v683 = vpack.c.b16 %v579, %v577
    %v684 = vpack.c.b16 %v580, %v578
    %v685 = vpack.c.b16 %v583, %v581
    %v686 = vpack.c.b16 %v584, %v582
    %v687 = vpack.c.b16 %v587, %v585
    %v688 = vpack.c.b16 %v588, %v586
    %v689 = vpack.c.b16 %v591, %v589
    %v690 = vpack.c.b16 %v592, %v590
    %v691 = vpack.c.b16 %v595, %v593
    %v692 = vpack.c.b16 %v596, %v594
    %v693 = vpack.c.b16 %v599, %v597
    %v694 = vpack.c.b16 %v600, %v598
    %v695 = vpack.c.b16 %v603, %v601
    %v696 = vpack.c.b16 %v604, %v602
    %v697 = vpack.c.b16 %v607, %v605
    %v698 = vpack.c.b16 %v608, %v606
    %v699 = vpack.c.b16 %v611, %v609
    %v700 = vpack.c.b16 %v612, %v610
    %v701 = vpack.c.b16 %v615, %v613
    %v702 = vpack.c.b16 %v616, %v614
    %v703 = vpack.c.b16 %v619, %v617
    %v704 = vpack.c.b16 %v620, %v618
    %v705 = vpack.c.b16 %v623, %v621
    %v706 = vpack.c.b16 %v624, %v622
    %v707 = vpack.c.b16 %v627, %v625
    %v708 = vpack.c.b16 %v628, %v626
    %v709 = vpack.c.b16 %v631, %v629
    %v710 = vpack.c.b16 %v632, %v630
    %v711 = vpack.c.b16 %v635, %v633
    %v712 = vpack.c.b16 %v636, %v634
    %v713 = vpack.c.b16 %v639, %v637
    %v714 = vpack.c.b16 %v640, %v638
    %v715 = vpack.c.b16 %v643, %v641
    %v716 = vpack.c.b16 %v644, %v642
    %v717 = vpack.c.b16 %v647, %v645
    %v718 = vpack.c.b16 %v648, %v646
    %v719 = vpack.c.b16 %v651, %v649
    %v720 = vpack.c.b16 %v652, %v650
    %v721 = vpack.c.b16 %v655, %v653
    %v722 = vpack.c.b16 %v656, %v654
    %v723 = vpack.c.b16 %v659, %v657
    %v724 = vpack.c.b16 %v660, %v658
    %789 = vmatprep.subr.bf16.mxu0 %v662
    %790 = vmatpush1.bf16.msra.mxu0 %v661
    %791 = vmatprep.subr.bf16.mxu0 %v664
    %792 = vmatpush1.bf16.msra.mxu0 %v663
    %793 = vmatprep.subr.bf16.mxu0 %v666
    %794 = vmatpush1.bf16.msra.mxu0 %v665
    %795 = vmatprep.subr.bf16.mxu0 %v668
    %796 = vmatpush1.bf16.msra.mxu0 %v667
    %797 = vmatprep.subr.bf16.mxu0 %v670
    %798 = vmatpush1.bf16.msra.mxu0 %v669
    %799 = vmatprep.subr.bf16.mxu0 %v672
    %800 = vmatpush1.bf16.msra.mxu0 %v671
    %801 = vmatprep.subr.bf16.mxu0 %v674
    %802 = vmatpush1.bf16.msra.mxu0 %v673
    %803 = vmatprep.subr.bf16.mxu0 %v676
    %804 = vmatpush1.bf16.msra.mxu0 %v675
    %805 = vmatprep.subr.bf16.mxu0 %v678
    %806 = vmatpush1.bf16.msra.mxu0 %v677
    %807 = vmatprep.subr.bf16.mxu0 %v680
    %808 = vmatpush1.bf16.msra.mxu0 %v679
    %809 = vmatprep.subr.bf16.mxu0 %v682
    %810 = vmatpush1.bf16.msra.mxu0 %v681
    %811 = vmatprep.subr.bf16.mxu0 %v684
    %812 = vmatpush1.bf16.msra.mxu0 %v683
    %813 = vmatprep.subr.bf16.mxu0 %v686
    %814 = vmatpush1.bf16.msra.mxu0 %v685
    %815 = vmatprep.subr.bf16.mxu0 %v688
    %816 = vmatpush1.bf16.msra.mxu0 %v687
    %817 = vmatprep.subr.bf16.mxu0 %v690
    %818 = vmatpush1.bf16.msra.mxu0 %v689
    %819 = vmatprep.subr.bf16.mxu0 %v692
    %820 = vmatpush1.bf16.msra.mxu0 %v691
    %821 = vmatprep.mubr.bf16.mxu0 %v390
    %822 = vmatmul.mubr.bf16.gmra.mrb[0].mxu0 %v389
    %v823 = vpop.f32.mrb[0].mxu0
    %v824 = vadd.f32 %v462, %v823
    %v825 = vpop.f32.mrb[0].mxu0
    %v826 = vadd.f32 %v466, %v825
    %v827 = vpop.f32.mrb[0].mxu0
    %v828 = vpop.f32.mrb[0].mxu0
    %829 = vdwg.mxu0
    %830 = vmatprep.subr.bf16.mxu0 %v694
    %831 = vmatpush1.bf16.msra.mxu0 %v693
    %832 = vmatprep.subr.bf16.mxu0 %v696
    %833 = vmatpush1.bf16.msra.mxu0 %v695
    %834 = vmatprep.subr.bf16.mxu0 %v698
    %835 = vmatpush1.bf16.msra.mxu0 %v697
    %836 = vmatprep.subr.bf16.mxu0 %v700
    %837 = vmatpush1.bf16.msra.mxu0 %v699
    %838 = vmatprep.subr.bf16.mxu0 %v702
    %839 = vmatpush1.bf16.msra.mxu0 %v701
    %840 = vmatprep.subr.bf16.mxu0 %v704
    %841 = vmatpush1.bf16.msra.mxu0 %v703
    %842 = vmatprep.subr.bf16.mxu0 %v706
    %843 = vmatpush1.bf16.msra.mxu0 %v705
    %844 = vmatprep.subr.bf16.mxu0 %v708
    %845 = vmatpush1.bf16.msra.mxu0 %v707
    %846 = vmatprep.subr.bf16.mxu0 %v710
    %847 = vmatpush1.bf16.msra.mxu0 %v709
    %848 = vmatprep.subr.bf16.mxu0 %v712
    %849 = vmatpush1.bf16.msra.mxu0 %v711
    %850 = vmatprep.subr.bf16.mxu0 %v714
    %851 = vmatpush1.bf16.msra.mxu0 %v713
    %852 = vmatprep.subr.bf16.mxu0 %v716
    %853 = vmatpush1.bf16.msra.mxu0 %v715
    %854 = vmatprep.subr.bf16.mxu0 %v718
    %855 = vmatpush1.bf16.msra.mxu0 %v717
    %856 = vmatprep.subr.bf16.mxu0 %v720
    %857 = vmatpush1.bf16.msra.mxu0 %v719
    %858 = vmatprep.subr.bf16.mxu0 %v722
    %859 = vmatpush1.bf16.msra.mxu0 %v721
    %860 = vmatprep.subr.bf16.mxu0 %v724
    %861 = vmatpush1.bf16.msra.mxu0 %v723
    %862 = vmatprep.mubr.bf16.mxu0 %v392
    %863 = vmatmul.mubr.bf16.gmra.mrb[0].mxu0 %v391
    %v864 = vpop.f32.mrb[0].mxu0
    %v865 = vadd.f32 %v824, %v864
    %v866 = vpop.f32.mrb[0].mxu0
    %v867 = vadd.f32 %v826, %v866
    %v868 = vpop.f32.mrb[0].mxu0
    %v869 = vpop.f32.mrb[0].mxu0
    %870 = vdwg.mxu0
    %v871 = vmax.f32 %v865, 0.0
    %v872 = vmax.f32 %v867, 0.0
    %v873 = vpack.c.bf16 %v871, %v871
    %v874 = vpack.c.bf16 %v872, %v872
    %v875 = vld [vmem:[#allocation9] sm:$0xf]
    %v876 = vld [vmem:[#allocation9 + $0x4] sm:$0xf]
    %v877 = vld [vmem:[#allocation9 + $0x8] sm:$0xf]
    %v878 = vld [vmem:[#allocation9 + $0xc] sm:$0xf]
    %v879 = vld [vmem:[#allocation9 + $0x10] sm:$0xf]
    %v880 = vld [vmem:[#allocation9 + $0x14] sm:$0xf]
    %v881 = vld [vmem:[#allocation9 + $0x18] sm:$0xf]
    %v882 = vld [vmem:[#allocation9 + $0x1c] sm:$0xf]
    %v883 = vld [vmem:[#allocation9 + $0x20] sm:$0xf]
    %v884 = vld [vmem:[#allocation9 + $0x24] sm:$0xf]
    %v885 = vld [vmem:[#allocation9 + $0x28] sm:$0xf]
    %v886 = vld [vmem:[#allocation9 + $0x2c] sm:$0xf]
    %v887 = vld [vmem:[#allocation9 + $0x30] sm:$0xf]
    %v888 = vld [vmem:[#allocation9 + $0x34] sm:$0xf]
    %v889 = vld [vmem:[#allocation9 + $0x38] sm:$0xf]
    %v890 = vld [vmem:[#allocation9 + $0x3c] sm:$0xf]
    %v891 = vld [vmem:[#allocation9 + $0x40] sm:$0xf]
    %v892 = vld [vmem:[#allocation9 + $0x44] sm:$0xf]
    %v893 = vld [vmem:[#allocation9 + $0x48] sm:$0xf]
    %v894 = vld [vmem:[#allocation9 + $0x4c] sm:$0xf]
    %v895 = vld [vmem:[#allocation9 + $0x50] sm:$0xf]
    %v896 = vld [vmem:[#allocation9 + $0x54] sm:$0xf]
    %v897 = vld [vmem:[#allocation9 + $0x58] sm:$0xf]
    %v898 = vld [vmem:[#allocation9 + $0x5c] sm:$0xf]
    %v899 = vld [vmem:[#allocation9 + $0x60] sm:$0xf]
    %v900 = vld [vmem:[#allocation9 + $0x64] sm:$0xf]
    %v901 = vld [vmem:[#allocation9 + $0x68] sm:$0xf]
    %v902 = vld [vmem:[#allocation9 + $0x6c] sm:$0xf]
    %v903 = vld [vmem:[#allocation9 + $0x70] sm:$0xf]
    %v904 = vld [vmem:[#allocation9 + $0x74] sm:$0xf]
    %v905 = vld [vmem:[#allocation9 + $0x78] sm:$0xf]
    %v906 = vld [vmem:[#allocation9 + $0x7c] sm:$0xf]
    %v907 = vld [vmem:[%s6] sm:$0x1]
    %v909 = vlaneseq
    %v910 = vshrl.u32 %v909, 7
    %v911 = vsub.s32 0, %v910
    %v912 = vrot.slane %v907, %v911
    %v946 = vunpack.c.l.b16 %v875
    %v947 = vunpack.c.l.b16 %v876
    %v948 = vunpack.c.l.b16 %v877
    %v949 = vunpack.c.l.b16 %v878
    %v950 = vunpack.c.l.b16 %v879
    %v951 = vunpack.c.l.b16 %v880
    %v952 = vunpack.c.l.b16 %v881
    %v953 = vunpack.c.l.b16 %v882
    %v954 = vunpack.c.l.b16 %v883
    %v955 = vunpack.c.l.b16 %v884
    %v956 = vunpack.c.l.b16 %v885
    %v957 = vunpack.c.l.b16 %v886
    %v958 = vunpack.c.l.b16 %v887
    %v959 = vunpack.c.l.b16 %v888
    %v960 = vunpack.c.l.b16 %v889
    %v961 = vunpack.c.l.b16 %v890
    %v962 = vunpack.c.l.b16 %v891
    %v963 = vunpack.c.l.b16 %v892
    %v964 = vunpack.c.l.b16 %v893
    %v965 = vunpack.c.l.b16 %v894
    %v966 = vunpack.c.l.b16 %v895
    %v967 = vunpack.c.l.b16 %v896
    %v968 = vunpack.c.l.b16 %v897
    %v969 = vunpack.c.l.b16 %v898
    %v970 = vunpack.c.l.b16 %v899
    %v971 = vunpack.c.l.b16 %v900
    %v972 = vunpack.c.l.b16 %v901
    %v973 = vunpack.c.l.b16 %v902
    %v974 = vunpack.c.l.b16 %v903
    %v975 = vunpack.c.l.b16 %v904
    %v976 = vunpack.c.l.b16 %v905
    %v977 = vunpack.c.l.b16 %v906
    %v978 = vpack.c.b16 %v947, %v946
    %v979 = vpack.c.b16 %v949, %v948
    %v980 = vpack.c.b16 %v951, %v950
    %v981 = vpack.c.b16 %v953, %v952
    %v982 = vpack.c.b16 %v955, %v954
    %v983 = vpack.c.b16 %v957, %v956
    %v984 = vpack.c.b16 %v959, %v958
    %v985 = vpack.c.b16 %v961, %v960
    %v986 = vpack.c.b16 %v963, %v962
    %v987 = vpack.c.b16 %v965, %v964
    %v988 = vpack.c.b16 %v967, %v966
    %v989 = vpack.c.b16 %v969, %v968
    %v990 = vpack.c.b16 %v971, %v970
    %v991 = vpack.c.b16 %v973, %v972
    %v992 = vpack.c.b16 %v975, %v974
    %v993 = vpack.c.b16 %v977, %v976
    %1010 = vmatprep.subr.bf16.mxu0 0
    %1011 = vmatpush1.bf16.msra.mxu0 %v978
    %1012 = vmatprep.subr.bf16.mxu0 0
    %1013 = vmatpush1.bf16.msra.mxu0 %v979
    %1014 = vmatprep.subr.bf16.mxu0 0
    %1015 = vmatpush1.bf16.msra.mxu0 %v980
    %1016 = vmatprep.subr.bf16.mxu0 0
    %1017 = vmatpush1.bf16.msra.mxu0 %v981
    %1018 = vmatprep.subr.bf16.mxu0 0
    %1019 = vmatpush1.bf16.msra.mxu0 %v982
    %1020 = vmatprep.subr.bf16.mxu0 0
    %1021 = vmatpush1.bf16.msra.mxu0 %v983
    %1022 = vmatprep.subr.bf16.mxu0 0
    %1023 = vmatpush1.bf16.msra.mxu0 %v984
    %1024 = vmatprep.subr.bf16.mxu0 0
    %1025 = vmatpush1.bf16.msra.mxu0 %v985
    %1026 = vmatprep.subr.bf16.mxu0 0
    %1027 = vmatpush1.bf16.msra.mxu0 %v986
    %1028 = vmatprep.subr.bf16.mxu0 0
    %1029 = vmatpush1.bf16.msra.mxu0 %v987
    %1030 = vmatprep.subr.bf16.mxu0 0
    %1031 = vmatpush1.bf16.msra.mxu0 %v988
    %1032 = vmatprep.subr.bf16.mxu0 0
    %1033 = vmatpush1.bf16.msra.mxu0 %v989
    %1034 = vmatprep.subr.bf16.mxu0 0
    %1035 = vmatpush1.bf16.msra.mxu0 %v990
    %1036 = vmatprep.subr.bf16.mxu0 0
    %1037 = vmatpush1.bf16.msra.mxu0 %v991
    %1038 = vmatprep.subr.bf16.mxu0 0
    %1039 = vmatpush1.bf16.msra.mxu0 %v992
    %1040 = vmatprep.subr.bf16.mxu0 0
    %1041 = vmatpush1.bf16.msra.mxu0 %v993
    %1042 = vmatprep.mubr.bf16.mxu0 %v874
    %1043 = vmatmul.mubr.bf16.gmra.mrb[0].mxu0 %v873
    %v1044 = vpop.f32.mrb[0].mxu0
    %v1045 = vadd.f32 %v912, %v1044
    %v1046 = vpop.f32.mrb[0].mxu0
    %v1047 = vpop.f32.mrb[0].mxu0
    %v1048 = vpop.f32.mrb[0].mxu0
    %1049 = vdwg.mxu0
    %v1050 = vmax.f32 %v1045, 0.0
    %v1051 = vld [vmem:[%s7] sm:$0xff]
    %1052 = vmatprep.subr.mxu0 0.0
    %1053 = vmatpush1.xpose.msra.mxu0 %v1050
    %1054 = vmatprep.subr.mxu0 0.0
    %1055 = vmatpush1.xpose.msra.mxu0 0.0
    %1056 = vmatprep.subr.mxu0 0.0
    %1057 = vmatpush1.xpose.msra.mxu0 0.0
    %1058 = vmatprep.subr.mxu0 0.0
    %1059 = vmatpush1.xpose.msra.mxu0 0.0
    %1060 = vmatprep.subr.mxu0 0.0
    %1061 = vmatpush1.xpose.msra.mxu0 0.0
    %1062 = vmatprep.subr.mxu0 0.0
    %1063 = vmatpush1.xpose.msra.mxu0 0.0
    %1064 = vmatprep.subr.mxu0 0.0
    %1065 = vmatpush1.xpose.msra.mxu0 0.0
    %1066 = vmatprep.subr.mxu0 0.0
    %1067 = vmatpush1.xpose.msra.mxu0 0.0
    %1068 = vmatprep.subr.mxu0 0.0
    %1069 = vmatpush1.xpose.msra.mxu0 0.0
    %1070 = vmatprep.subr.mxu0 0.0
    %1071 = vmatpush1.xpose.msra.mxu0 0.0
    %1072 = vmatprep.subr.mxu0 0.0
    %1073 = vmatpush1.xpose.msra.mxu0 0.0
    %1074 = vmatprep.subr.mxu0 0.0
    %1075 = vmatpush1.xpose.msra.mxu0 0.0
    %1076 = vmatprep.subr.mxu0 0.0
    %1077 = vmatpush1.xpose.msra.mxu0 0.0
    %1078 = vmatprep.subr.mxu0 0.0
    %1079 = vmatpush1.xpose.msra.mxu0 0.0
    %1080 = vmatprep.subr.mxu0 0.0
    %1081 = vmatpush1.xpose.msra.mxu0 0.0
    %1082 = vmatprep.subr.mxu0 0.0
    %1083 = vmatpush1.xpose.msra.mxu0 0.0
    %1084 = vmatprep.subr.mxu0 0.0
    %1085 = vmatpush1.xpose.msra.mxu0 0.0
    %1086 = vmatprep.subr.mxu0 0.0
    %1087 = vmatpush1.xpose.msra.mxu0 0.0
    %1088 = vmatprep.subr.mxu0 0.0
    %1089 = vmatpush1.xpose.msra.mxu0 0.0
    %1090 = vmatprep.subr.mxu0 0.0
    %1091 = vmatpush1.xpose.msra.mxu0 0.0
    %1092 = vmatprep.subr.mxu0 0.0
    %1093 = vmatpush1.xpose.msra.mxu0 0.0
    %1094 = vmatprep.subr.mxu0 0.0
    %1095 = vmatpush1.xpose.msra.mxu0 0.0
    %1096 = vmatprep.subr.mxu0 0.0
    %1097 = vmatpush1.xpose.msra.mxu0 0.0
    %1098 = vmatprep.subr.mxu0 0.0
    %1099 = vmatpush1.xpose.msra.mxu0 0.0
    %1100 = vmatprep.subr.mxu0 0.0
    %1101 = vmatpush1.xpose.msra.mxu0 0.0
    %1102 = vmatprep.subr.mxu0 0.0
    %1103 = vmatpush1.xpose.msra.mxu0 0.0
    %1104 = vmatprep.subr.mxu0 0.0
    %1105 = vmatpush1.xpose.msra.mxu0 0.0
    %1106 = vmatprep.subr.mxu0 0.0
    %1107 = vmatpush1.xpose.msra.mxu0 0.0
    %1108 = vmatprep.subr.mxu0 0.0
    %1109 = vmatpush1.xpose.msra.mxu0 0.0
    %1110 = vmatprep.subr.mxu0 0.0
    %1111 = vmatpush1.xpose.msra.mxu0 0.0
    %1112 = vmatprep.subr.mxu0 0.0
    %1113 = vmatpush1.xpose.msra.mxu0 0.0
    %1114 = vmatprep.subr.mxu0 0.0
    %1115 = vmatpush1.xpose.msra.mxu0 0.0
    %1116 = vmatprep.mubr.f32.mxu0 0.0
    %1117 = vmatmul.mubr.f32.gmra.mrb[0].mxu0 %v1051
    %v1118 = vpop.f32.mrb[0].mxu0
    %v1119 = vadd.f32 0.0, %v1118
    %v1120 = vpop.f32.mrb[0].mxu0
    %1121 = vdwg.mxu0
    %s1122 = sld [smem:[#allocation2]]
    %v1123 = vstv %s1122
    %v1124 = vadd.f32 %v1119, %v1123
    %vm1125 = vcmask 57344
    %1126 = vst.msk [vmem:[#allocation11] sm:$0x1] %vm1125, %v1124
    // Predicated region
    $region54: #{tpu_custom_call.1} parent=1 // pred_check
      _
    $region55: #{tpu_custom_call.1} parent=1 // pred_check_branch
      %1128 = sbr.rel (0) target = $region57
    $region56: #{tpu_custom_call.1} parent=1 // pred_region
      %s1130 = ssub.s32 16, 16
      %1131 = vsyncadd [#allocation5], %s1130
      %s1133 = sshll.u32 [#allocation11], 4
      %s1134 = int_to_ptr.vmem [resolvable:$true] %s1133
      %1136 = dma.vmem_to_hbm [thread:$0]  %s1134, 16, %s9, [#allocation5]
    $region57: #{tpu_custom_call.1} parent=1 // pred_fallthru
      _
    // Predicated region
    $region58: #{tpu_custom_call.1} parent=1 // pred_check
      _
    $region59: #{tpu_custom_call.1} parent=1 // pred_check_branch
      %1138 = sbr.rel (0) target = $region61
    $region60: #{tpu_custom_call.1} parent=1 // pred_region
      %1139 = dma.done [#allocation5], 16
    $region61: #{tpu_custom_call.1} parent=1 // pred_fallthru
      _
    %1140 = vsyncpa [#allocation4], 1
    %1141 = vsyncpa [#allocation7], 1
    %1142 = vsyncpa [#allocation10], 1
    %1143 = vsyncpa [#allocation5], 1

</llo_original>
